<compile_context>
chip_gen: v5e
topology: v5e:2x2
jax: 0.10.0
libtpu: 0.0.40
codegen_flags: <defaults>
</compile_context>

<pallas_src>
import numpy as np

import jax
import jax.numpy as jnp
from jax import lax
from jax.experimental import pallas as pl
from jax.experimental.pallas import tpu as pltpu  # noqa: F401 (TPU backend)

# ---- problem sizes (small, consistent with the module) ----------------------
B = 2           # batch
S = 8           # sequence length
D = 32          # input_dim (model dim)
H = 4           # num_heads
DH = D // H     # per-head dim
F = 64          # feature_dim (feed-forward hidden)
EPS = 1e-5      # LayerNorm eps (PyTorch default)
BS = B * S
VEC_LANES = 128  # lane width of the packed small-vector slab


def _layer_norm(x, gamma, beta):
    mu = jnp.mean(x, axis=-1, keepdims=True)
    var = jnp.mean((x - mu) ** 2, axis=-1, keepdims=True)
    return (x - mu) * lax.rsqrt(var + EPS) * gamma + beta


def transformer_layer_kernel(x_ref, bias_ref, mcol_ref,
                             wqkv_ref, wo_ref, w1_ref, w2_ref, vec_ref,
                             o_ref):
    # Single gridless invocation; everything lives in VMEM.
    x = x_ref[...]          # (BS, D)  batch folded into rows
    bias = bias_ref[...]    # (BS, BS) additive attention bias (block-diag + key mask)
    mcol = mcol_ref[...]    # (BS, 1)  output-row mask

    # --- unpack the small-vector slab (static row/lane slices) ---------------
    bqkv = vec_ref[0:1, 0:3 * D]     # (1, 96)
    bo   = vec_ref[1:2, 0:D]
    g1   = vec_ref[2:3, 0:D]
    be1  = vec_ref[3:4, 0:D]
    bf1  = vec_ref[4:5, 0:F]
    bf2  = vec_ref[5:6, 0:D]
    g2   = vec_ref[6:7, 0:D]
    be2  = vec_ref[7:8, 0:D]

    scale = jnp.float32(1.0 / (DH ** 0.5))

    # --- multi-head self-attention --------------------------------------------
    # Fused QKV projection: one (BS, D) @ (D, 3D) matmul.
    qkv = jnp.dot(x, wqkv_ref[...], preferred_element_type=jnp.float32) + bqkv  # (BS, 3D)

    # Per-head scores (contract DH of both operands directly; no kh.T), stacked
    # so the softmax runs once over all heads.
    scores = []
    for h in range(H):                                   # static unroll over heads
        qh = qkv[:, h * DH:(h + 1) * DH]
        kh = qkv[:, D + h * DH:D + (h + 1) * DH]
        scores.append(lax.dot_general(qh, kh, (((1,), (1,)), ((), ())),
                                      preferred_element_type=jnp.float32))       # (BS, BS)
    s = jnp.stack(scores, axis=0)                        # (H, BS, BS)
    s = s * scale + bias[None, :, :]                     # masked / cross-batch keys -> -1e9
    s_max = jnp.max(s, axis=-1, keepdims=True)
    p = jnp.exp(s - s_max)
    p = p / jnp.sum(p, axis=-1, keepdims=True)           # exact divide (tight f32 parity)

    # Per-head context, lane-concat, then a single fused output projection.
    heads = []
    for h in range(H):
        vh = qkv[:, 2 * D + h * DH:2 * D + (h + 1) * DH]
        heads.append(jnp.dot(p[h], vh, preferred_element_type=jnp.float32))      # (BS, DH)
    ctx = jnp.concatenate(heads, axis=-1)                # (BS, D)
    attn = jnp.dot(ctx, wo_ref[...], preferred_element_type=jnp.float32) + bo

    # x *= attention_mask.unsqueeze(-1)
    attn = attn * mcol
    # TODO(synk): dropout is eval-mode identity (module instantiated with dropout=0.0)
    x1 = _layer_norm(attn + x, g1, be1)

    # --- feed-forward ----------------------------------------------------------
    ff = jnp.dot(x1, w1_ref[...], preferred_element_type=jnp.float32) + bf1
    ff = jnp.maximum(ff, 0.0)                            # ReLU
    ff = jnp.dot(ff, w2_ref[...], preferred_element_type=jnp.float32) + bf2
    ff = ff * mcol
    x2 = _layer_norm(ff + x1, g2, be2)
    o_ref[...] = (x2 * mcol).astype(o_ref.dtype)


def prepare_params(params):
    """One-time weight re-layout, hoisted out of the per-step hot path."""
    (wq, bq, wk, bk, wv, bv, wo, bo, g1, be1, w1, bf1, w2, bf2, g2, be2) = params
    wqkv = jnp.concatenate([wq, wk, wv], axis=1)                      # (D, 3D)
    bqkv = jnp.concatenate([bq, bk, bv], axis=1)                      # (1, 3D)

    def pad_row(v):
        v = v.reshape(1, -1).astype(jnp.float32)
        return jnp.pad(v, ((0, 0), (0, VEC_LANES - v.shape[1])))

    vec_slab = jnp.concatenate(
        [pad_row(bqkv), pad_row(bo), pad_row(g1), pad_row(be1),
         pad_row(bf1), pad_row(bf2), pad_row(g2), pad_row(be2)], axis=0)   # (8, 128)

    return (wqkv.astype(jnp.float32), wo.astype(jnp.float32),
            w1.astype(jnp.float32), w2.astype(jnp.float32), vec_slab)


@jax.jit
def transformer_layer(x, attention_mask, prepared):
    """x: (B, S, D) f32, attention_mask: (B, S) f32 of {0,1}."""
    wqkv, wo, w1, w2, vec_slab = prepared
    b, s, d = x.shape
    bs = b * s

    # Fold batch into the row (sublane) axis.
    x_flat = x.reshape(bs, d)
    mcol = attention_mask.reshape(bs, 1).astype(jnp.float32)

    # Additive attention bias: 0 where (same batch AND key kept), -1e9 elsewhere.
    rows = jnp.arange(bs)
    same_batch = (rows[:, None] // s) == (rows[None, :] // s)
    key_keep = attention_mask.reshape(1, bs) > 0.0
    attn_bias = jnp.where(same_batch & key_keep, 0.0, -1e9).astype(jnp.float32)

    out_flat = pl.pallas_call(
        transformer_layer_kernel,
        out_shape=jax.ShapeDtypeStruct((bs, d), jnp.float32),
    )(x_flat, attn_bias, mcol, wqkv, wo, w1, w2, vec_slab)
    return out_flat.reshape(b, s, d)


# ---- pure-JAX reference (same math as the PyTorch module) --------------------
def reference(x, mask, params):
    (wq, bq, wk, bk, wv, bv, wo, bo, g1, be1, w1, bf1, w2, bf2, g2, be2) = params
    mrow = mask[:, None, :]          # (B,1,S)
    mcol = mask[:, :, None]          # (B,S,1)
    q = x @ wq + bq
    k = x @ wk + bk
    v = x @ wv + bv
    qh = q.reshape(B, S, H, DH).transpose(0, 2, 1, 3)
    kh = k.reshape(B, S, H, DH).transpose(0, 2, 1, 3)
    vh = v.reshape(B, S, H, DH).transpose(0, 2, 1, 3)
    sc = jnp.einsum("bhqd,bhkd->bhqk", qh, kh) / (DH ** 0.5)
    sc = jnp.where(mrow[:, None, :, :] > 0, sc, -1e9)
    p = jax.nn.softmax(sc, axis=-1)
    attn = jnp.einsum("bhqk,bhkd->bhqd", p, vh).transpose(0, 2, 1, 3).reshape(B, S, D)
    attn = attn @ wo + bo
    attn = attn * mcol
    x1 = _layer_norm(attn + x, g1, be1)
    ff = jnp.maximum(x1 @ w1 + bf1, 0.0) @ w2 + bf2
    ff = ff * mcol
    x2 = _layer_norm(ff + x1, g2, be2)
    return x2 * mcol


if __name__ == "__main__":
    key = jax.random.PRNGKey(0)
    keys = jax.random.split(key, 12)

    x = jax.random.normal(keys[0], (B, S, D), dtype=jnp.float32)
    # attention mask: 1 = keep, 0 = padding (last 2 tokens of batch 1 padded)
    mask = jnp.ones((B, S), dtype=jnp.float32).at[1, -2:].set(0.0)

    sd = 0.05
    params = (
        sd * jax.random.normal(keys[1], (D, D)), jnp.zeros((1, D)),   # Wq, bq
        sd * jax.random.normal(keys[2], (D, D)), jnp.zeros((1, D)),   # Wk, bk
        sd * jax.random.normal(keys[3], (D, D)), jnp.zeros((1, D)),   # Wv, bv
        sd * jax.random.normal(keys[4], (D, D)), jnp.zeros((1, D)),   # Wo, bo
        jnp.ones((1, D)), jnp.zeros((1, D)),                          # LN1 gamma, beta
        sd * jax.random.normal(keys[5], (D, F)), jnp.zeros((1, F)),   # FF W1, b1
        sd * jax.random.normal(keys[6], (F, D)), jnp.zeros((1, D)),   # FF W2, b2
        jnp.ones((1, D)), jnp.zeros((1, D)),                          # LN2 gamma, beta
    )
    params = tuple(p.astype(jnp.float32) for p in params)

    prepared = prepare_params(params)          # one-time layout work (hoisted)
    out = transformer_layer(x, mask, prepared)
    out = jax.block_until_ready(out)

    ref = reference(x, mask, params)
    np.testing.assert_allclose(np.asarray(out), np.asarray(ref), atol=1e-4, rtol=1e-4)
    print("KERNEL_OK")
</pallas_src>

<mosaic_0001>
module attributes {stable_mosaic.version = 11 : i64} {
  func.func @transformer_layer_kernel(%arg0: memref<16x32xf32, #tpu.memory_space<vmem>>, %arg1: memref<16x16xf32, #tpu.memory_space<vmem>>, %arg2: memref<16x1xf32, #tpu.memory_space<vmem>>, %arg3: memref<32x96xf32, #tpu.memory_space<vmem>>, %arg4: memref<32x32xf32, #tpu.memory_space<vmem>>, %arg5: memref<32x64xf32, #tpu.memory_space<vmem>>, %arg6: memref<64x32xf32, #tpu.memory_space<vmem>>, %arg7: memref<8x128xf32, #tpu.memory_space<vmem>>, %arg8: memref<16x32xf32, #tpu.memory_space<vmem>>) attributes {dimension_semantics = [], scalar_prefetch = 0 : i64, scratch_operands = 0 : i64, tpu.core_type = #tpu.core_type<tc>} {
    %c0 = arith.constant 0 : index
    %c0_0 = arith.constant 0 : index
    %0 = vector.load %arg0[%c0, %c0_0] : memref<16x32xf32, #tpu.memory_space<vmem>>, vector<16x32xf32>
    %c0_1 = arith.constant 0 : index
    %c0_2 = arith.constant 0 : index
    %1 = vector.load %arg1[%c0_1, %c0_2] : memref<16x16xf32, #tpu.memory_space<vmem>>, vector<16x16xf32>
    %c0_3 = arith.constant 0 : index
    %c0_4 = arith.constant 0 : index
    %2 = vector.load %arg2[%c0_3, %c0_4] : memref<16x1xf32, #tpu.memory_space<vmem>>, vector<16x1xf32>
    %c0_5 = arith.constant 0 : index
    %c0_6 = arith.constant 0 : index
    %3 = vector.load %arg7[%c0_5, %c0_6] : memref<8x128xf32, #tpu.memory_space<vmem>>, vector<1x96xf32>
    %c1 = arith.constant 1 : index
    %c0_7 = arith.constant 0 : index
    %4 = vector.load %arg7[%c1, %c0_7] : memref<8x128xf32, #tpu.memory_space<vmem>>, vector<1x32xf32>
    %c2 = arith.constant 2 : index
    %c0_8 = arith.constant 0 : index
    %5 = vector.load %arg7[%c2, %c0_8] : memref<8x128xf32, #tpu.memory_space<vmem>>, vector<1x32xf32>
    %c3 = arith.constant 3 : index
    %c0_9 = arith.constant 0 : index
    %6 = vector.load %arg7[%c3, %c0_9] : memref<8x128xf32, #tpu.memory_space<vmem>>, vector<1x32xf32>
    %c4 = arith.constant 4 : index
    %c0_10 = arith.constant 0 : index
    %7 = vector.load %arg7[%c4, %c0_10] : memref<8x128xf32, #tpu.memory_space<vmem>>, vector<1x64xf32>
    %c5 = arith.constant 5 : index
    %c0_11 = arith.constant 0 : index
    %8 = vector.load %arg7[%c5, %c0_11] : memref<8x128xf32, #tpu.memory_space<vmem>>, vector<1x32xf32>
    %c6 = arith.constant 6 : index
    %c0_12 = arith.constant 0 : index
    %9 = vector.load %arg7[%c6, %c0_12] : memref<8x128xf32, #tpu.memory_space<vmem>>, vector<1x32xf32>
    %c7 = arith.constant 7 : index
    %c0_13 = arith.constant 0 : index
    %10 = vector.load %arg7[%c7, %c0_13] : memref<8x128xf32, #tpu.memory_space<vmem>>, vector<1x32xf32>
    %c0_14 = arith.constant 0 : index
    %c0_15 = arith.constant 0 : index
    %11 = vector.load %arg3[%c0_14, %c0_15] : memref<32x96xf32, #tpu.memory_space<vmem>>, vector<32x96xf32>
    %cst = arith.constant dense<0.000000e+00> : vector<16x96xf32>
    %12 = tpu.matmul %0, %11, %cst {dimension_numbers = #tpu.dot_dimension_numbers<[1], [0], [0], [1], [0, 0, 1, 1], [], []>} : vector<16x32xf32>, vector<32x96xf32>, vector<16x96xf32> -> vector<16x96xf32>
    %13 = vector.broadcast %3 : vector<1x96xf32> to vector<16x96xf32>
    %14 = arith.addf %12, %13 : vector<16x96xf32>
    %15 = vector.extract_strided_slice %14 {offsets = [0, 0], sizes = [16, 8], strides = [1, 1]} : vector<16x96xf32> to vector<16x8xf32>
    %16 = vector.extract_strided_slice %14 {offsets = [0, 32], sizes = [16, 8], strides = [1, 1]} : vector<16x96xf32> to vector<16x8xf32>
    %cst_16 = arith.constant dense<0.000000e+00> : vector<16x16xf32>
    %17 = tpu.matmul %15, %16, %cst_16 {dimension_numbers = #tpu.dot_dimension_numbers<[1], [1], [0], [0], [0, 0, 1, 0], [], []>} : vector<16x8xf32>, vector<16x8xf32>, vector<16x16xf32> -> vector<16x16xf32>
    %18 = vector.extract_strided_slice %14 {offsets = [0, 8], sizes = [16, 8], strides = [1, 1]} : vector<16x96xf32> to vector<16x8xf32>
    %19 = vector.extract_strided_slice %14 {offsets = [0, 40], sizes = [16, 8], strides = [1, 1]} : vector<16x96xf32> to vector<16x8xf32>
    %cst_17 = arith.constant dense<0.000000e+00> : vector<16x16xf32>
    %20 = tpu.matmul %18, %19, %cst_17 {dimension_numbers = #tpu.dot_dimension_numbers<[1], [1], [0], [0], [0, 0, 1, 0], [], []>} : vector<16x8xf32>, vector<16x8xf32>, vector<16x16xf32> -> vector<16x16xf32>
    %21 = vector.extract_strided_slice %14 {offsets = [0, 16], sizes = [16, 8], strides = [1, 1]} : vector<16x96xf32> to vector<16x8xf32>
    %22 = vector.extract_strided_slice %14 {offsets = [0, 48], sizes = [16, 8], strides = [1, 1]} : vector<16x96xf32> to vector<16x8xf32>
    %cst_18 = arith.constant dense<0.000000e+00> : vector<16x16xf32>
    %23 = tpu.matmul %21, %22, %cst_18 {dimension_numbers = #tpu.dot_dimension_numbers<[1], [1], [0], [0], [0, 0, 1, 0], [], []>} : vector<16x8xf32>, vector<16x8xf32>, vector<16x16xf32> -> vector<16x16xf32>
    %24 = vector.extract_strided_slice %14 {offsets = [0, 24], sizes = [16, 8], strides = [1, 1]} : vector<16x96xf32> to vector<16x8xf32>
    %25 = vector.extract_strided_slice %14 {offsets = [0, 56], sizes = [16, 8], strides = [1, 1]} : vector<16x96xf32> to vector<16x8xf32>
    %cst_19 = arith.constant dense<0.000000e+00> : vector<16x16xf32>
    %26 = tpu.matmul %24, %25, %cst_19 {dimension_numbers = #tpu.dot_dimension_numbers<[1], [1], [0], [0], [0, 0, 1, 0], [], []>} : vector<16x8xf32>, vector<16x8xf32>, vector<16x16xf32> -> vector<16x16xf32>
    %27 = vector.shape_cast %17 : vector<16x16xf32> to vector<1x16x16xf32>
    %28 = vector.shape_cast %20 : vector<16x16xf32> to vector<1x16x16xf32>
    %29 = vector.shape_cast %23 : vector<16x16xf32> to vector<1x16x16xf32>
    %30 = vector.shape_cast %26 : vector<16x16xf32> to vector<1x16x16xf32>
    %31 = tpu.concatenate %27, %28, %29, %30 in 0 : vector<1x16x16xf32>, vector<1x16x16xf32>, vector<1x16x16xf32>, vector<1x16x16xf32> -> vector<4x16x16xf32>
    %cst_20 = arith.constant 0.353553385 : f32
    %32 = vector.broadcast %cst_20 : f32 to vector<4x16x16xf32>
    %33 = arith.mulf %31, %32 : vector<4x16x16xf32>
    %34 = vector.shape_cast %1 : vector<16x16xf32> to vector<1x16x16xf32>
    %35 = vector.broadcast %34 : vector<1x16x16xf32> to vector<4x16x16xf32>
    %36 = arith.addf %33, %35 : vector<4x16x16xf32>
    %cst_21 = arith.constant dense<0xFF800000> : vector<4x16xf32>
    %37 = vector.multi_reduction <maximumf>, %36, %cst_21 [2] : vector<4x16x16xf32> to vector<4x16xf32>
    %38 = vector.shape_cast %37 : vector<4x16xf32> to vector<4x16x1xf32>
    %39 = vector.broadcast %38 : vector<4x16x1xf32> to vector<4x16x16xf32>
    %40 = arith.subf %36, %39 : vector<4x16x16xf32>
    %41 = math.exp %40 : vector<4x16x16xf32>
    %cst_22 = arith.constant dense<0.000000e+00> : vector<4x16xf32>
    %42 = vector.multi_reduction <add>, %41, %cst_22 [2] : vector<4x16x16xf32> to vector<4x16xf32>
    %43 = vector.shape_cast %42 : vector<4x16xf32> to vector<4x16x1xf32>
    %44 = vector.broadcast %43 : vector<4x16x1xf32> to vector<4x16x16xf32>
    %45 = arith.divf %41, %44 : vector<4x16x16xf32>
    %46 = vector.extract_strided_slice %14 {offsets = [0, 64], sizes = [16, 8], strides = [1, 1]} : vector<16x96xf32> to vector<16x8xf32>
    %47 = vector.extract_strided_slice %45 {offsets = [0, 0, 0], sizes = [1, 16, 16], strides = [1, 1, 1]} : vector<4x16x16xf32> to vector<1x16x16xf32>
    %48 = vector.shape_cast %47 : vector<1x16x16xf32> to vector<16x16xf32>
    %cst_23 = arith.constant dense<0.000000e+00> : vector<16x8xf32>
    %49 = tpu.matmul %48, %46, %cst_23 {dimension_numbers = #tpu.dot_dimension_numbers<[1], [0], [0], [1], [0, 0, 1, 1], [], []>} : vector<16x16xf32>, vector<16x8xf32>, vector<16x8xf32> -> vector<16x8xf32>
    %50 = vector.extract_strided_slice %14 {offsets = [0, 72], sizes = [16, 8], strides = [1, 1]} : vector<16x96xf32> to vector<16x8xf32>
    %51 = vector.extract_strided_slice %45 {offsets = [1, 0, 0], sizes = [1, 16, 16], strides = [1, 1, 1]} : vector<4x16x16xf32> to vector<1x16x16xf32>
    %52 = vector.shape_cast %51 : vector<1x16x16xf32> to vector<16x16xf32>
    %cst_24 = arith.constant dense<0.000000e+00> : vector<16x8xf32>
    %53 = tpu.matmul %52, %50, %cst_24 {dimension_numbers = #tpu.dot_dimension_numbers<[1], [0], [0], [1], [0, 0, 1, 1], [], []>} : vector<16x16xf32>, vector<16x8xf32>, vector<16x8xf32> -> vector<16x8xf32>
    %54 = vector.extract_strided_slice %14 {offsets = [0, 80], sizes = [16, 8], strides = [1, 1]} : vector<16x96xf32> to vector<16x8xf32>
    %55 = vector.extract_strided_slice %45 {offsets = [2, 0, 0], sizes = [1, 16, 16], strides = [1, 1, 1]} : vector<4x16x16xf32> to vector<1x16x16xf32>
    %56 = vector.shape_cast %55 : vector<1x16x16xf32> to vector<16x16xf32>
    %cst_25 = arith.constant dense<0.000000e+00> : vector<16x8xf32>
    %57 = tpu.matmul %56, %54, %cst_25 {dimension_numbers = #tpu.dot_dimension_numbers<[1], [0], [0], [1], [0, 0, 1, 1], [], []>} : vector<16x16xf32>, vector<16x8xf32>, vector<16x8xf32> -> vector<16x8xf32>
    %58 = vector.extract_strided_slice %14 {offsets = [0, 88], sizes = [16, 8], strides = [1, 1]} : vector<16x96xf32> to vector<16x8xf32>
    %59 = vector.extract_strided_slice %45 {offsets = [3, 0, 0], sizes = [1, 16, 16], strides = [1, 1, 1]} : vector<4x16x16xf32> to vector<1x16x16xf32>
    %60 = vector.shape_cast %59 : vector<1x16x16xf32> to vector<16x16xf32>
    %cst_26 = arith.constant dense<0.000000e+00> : vector<16x8xf32>
    %61 = tpu.matmul %60, %58, %cst_26 {dimension_numbers = #tpu.dot_dimension_numbers<[1], [0], [0], [1], [0, 0, 1, 1], [], []>} : vector<16x16xf32>, vector<16x8xf32>, vector<16x8xf32> -> vector<16x8xf32>
    %62 = tpu.concatenate %49, %53, %57, %61 in 1 : vector<16x8xf32>, vector<16x8xf32>, vector<16x8xf32>, vector<16x8xf32> -> vector<16x32xf32>
    %c0_27 = arith.constant 0 : index
    %c0_28 = arith.constant 0 : index
    %63 = vector.load %arg4[%c0_27, %c0_28] : memref<32x32xf32, #tpu.memory_space<vmem>>, vector<32x32xf32>
    %cst_29 = arith.constant dense<0.000000e+00> : vector<16x32xf32>
    %64 = tpu.matmul %62, %63, %cst_29 {dimension_numbers = #tpu.dot_dimension_numbers<[1], [0], [0], [1], [0, 0, 1, 1], [], []>} : vector<16x32xf32>, vector<32x32xf32>, vector<16x32xf32> -> vector<16x32xf32>
    %65 = vector.broadcast %4 : vector<1x32xf32> to vector<16x32xf32>
    %66 = arith.addf %64, %65 : vector<16x32xf32>
    %67 = vector.broadcast %2 : vector<16x1xf32> to vector<16x32xf32>
    %68 = arith.mulf %66, %67 : vector<16x32xf32>
    %69 = arith.addf %68, %0 : vector<16x32xf32>
    %cst_30 = arith.constant dense<0.000000e+00> : vector<16xf32>
    %70 = vector.multi_reduction <add>, %69, %cst_30 [1] : vector<16x32xf32> to vector<16xf32>
    %71 = vector.shape_cast %70 : vector<16xf32> to vector<16x1xf32>
    %cst_31 = arith.constant 3.200000e+01 : f32
    %72 = vector.broadcast %cst_31 : f32 to vector<16x1xf32>
    %73 = arith.divf %71, %72 : vector<16x1xf32>
    %74 = vector.broadcast %73 : vector<16x1xf32> to vector<16x32xf32>
    %75 = arith.subf %69, %74 : vector<16x32xf32>
    %76 = arith.mulf %75, %75 : vector<16x32xf32>
    %cst_32 = arith.constant dense<0.000000e+00> : vector<16xf32>
    %77 = vector.multi_reduction <add>, %76, %cst_32 [1] : vector<16x32xf32> to vector<16xf32>
    %78 = vector.shape_cast %77 : vector<16xf32> to vector<16x1xf32>
    %cst_33 = arith.constant 3.200000e+01 : f32
    %79 = vector.broadcast %cst_33 : f32 to vector<16x1xf32>
    %80 = arith.divf %78, %79 : vector<16x1xf32>
    %81 = vector.broadcast %73 : vector<16x1xf32> to vector<16x32xf32>
    %82 = arith.subf %69, %81 : vector<16x32xf32>
    %cst_34 = arith.constant 9.99999974E-6 : f32
    %83 = vector.broadcast %cst_34 : f32 to vector<16x1xf32>
    %84 = arith.addf %80, %83 : vector<16x1xf32>
    %85 = math.rsqrt %84 : vector<16x1xf32>
    %86 = vector.broadcast %85 : vector<16x1xf32> to vector<16x32xf32>
    %87 = arith.mulf %82, %86 : vector<16x32xf32>
    %88 = vector.broadcast %5 : vector<1x32xf32> to vector<16x32xf32>
    %89 = arith.mulf %87, %88 : vector<16x32xf32>
    %90 = vector.broadcast %6 : vector<1x32xf32> to vector<16x32xf32>
    %91 = arith.addf %89, %90 : vector<16x32xf32>
    %c0_35 = arith.constant 0 : index
    %c0_36 = arith.constant 0 : index
    %92 = vector.load %arg5[%c0_35, %c0_36] : memref<32x64xf32, #tpu.memory_space<vmem>>, vector<32x64xf32>
    %cst_37 = arith.constant dense<0.000000e+00> : vector<16x64xf32>
    %93 = tpu.matmul %91, %92, %cst_37 {dimension_numbers = #tpu.dot_dimension_numbers<[1], [0], [0], [1], [0, 0, 1, 1], [], []>} : vector<16x32xf32>, vector<32x64xf32>, vector<16x64xf32> -> vector<16x64xf32>
    %94 = vector.broadcast %7 : vector<1x64xf32> to vector<16x64xf32>
    %95 = arith.addf %93, %94 : vector<16x64xf32>
    %cst_38 = arith.constant 0.000000e+00 : f32
    %96 = vector.broadcast %cst_38 : f32 to vector<16x64xf32>
    %97 = arith.maximumf %95, %96 : vector<16x64xf32>
    %c0_39 = arith.constant 0 : index
    %c0_40 = arith.constant 0 : index
    %98 = vector.load %arg6[%c0_39, %c0_40] : memref<64x32xf32, #tpu.memory_space<vmem>>, vector<64x32xf32>
    %cst_41 = arith.constant dense<0.000000e+00> : vector<16x32xf32>
    %99 = tpu.matmul %97, %98, %cst_41 {dimension_numbers = #tpu.dot_dimension_numbers<[1], [0], [0], [1], [0, 0, 1, 1], [], []>} : vector<16x64xf32>, vector<64x32xf32>, vector<16x32xf32> -> vector<16x32xf32>
    %100 = vector.broadcast %8 : vector<1x32xf32> to vector<16x32xf32>
    %101 = arith.addf %99, %100 : vector<16x32xf32>
    %102 = vector.broadcast %2 : vector<16x1xf32> to vector<16x32xf32>
    %103 = arith.mulf %101, %102 : vector<16x32xf32>
    %104 = arith.addf %103, %91 : vector<16x32xf32>
    %cst_42 = arith.constant dense<0.000000e+00> : vector<16xf32>
    %105 = vector.multi_reduction <add>, %104, %cst_42 [1] : vector<16x32xf32> to vector<16xf32>
    %106 = vector.shape_cast %105 : vector<16xf32> to vector<16x1xf32>
    %cst_43 = arith.constant 3.200000e+01 : f32
    %107 = vector.broadcast %cst_43 : f32 to vector<16x1xf32>
    %108 = arith.divf %106, %107 : vector<16x1xf32>
    %109 = vector.broadcast %108 : vector<16x1xf32> to vector<16x32xf32>
    %110 = arith.subf %104, %109 : vector<16x32xf32>
    %111 = arith.mulf %110, %110 : vector<16x32xf32>
    %cst_44 = arith.constant dense<0.000000e+00> : vector<16xf32>
    %112 = vector.multi_reduction <add>, %111, %cst_44 [1] : vector<16x32xf32> to vector<16xf32>
    %113 = vector.shape_cast %112 : vector<16xf32> to vector<16x1xf32>
    %cst_45 = arith.constant 3.200000e+01 : f32
    %114 = vector.broadcast %cst_45 : f32 to vector<16x1xf32>
    %115 = arith.divf %113, %114 : vector<16x1xf32>
    %116 = vector.broadcast %108 : vector<16x1xf32> to vector<16x32xf32>
    %117 = arith.subf %104, %116 : vector<16x32xf32>
    %cst_46 = arith.constant 9.99999974E-6 : f32
    %118 = vector.broadcast %cst_46 : f32 to vector<16x1xf32>
    %119 = arith.addf %115, %118 : vector<16x1xf32>
    %120 = math.rsqrt %119 : vector<16x1xf32>
    %121 = vector.broadcast %120 : vector<16x1xf32> to vector<16x32xf32>
    %122 = arith.mulf %117, %121 : vector<16x32xf32>
    %123 = vector.broadcast %9 : vector<1x32xf32> to vector<16x32xf32>
    %124 = arith.mulf %122, %123 : vector<16x32xf32>
    %125 = vector.broadcast %10 : vector<1x32xf32> to vector<16x32xf32>
    %126 = arith.addf %124, %125 : vector<16x32xf32>
    %127 = vector.broadcast %2 : vector<16x1xf32> to vector<16x32xf32>
    %128 = arith.mulf %126, %127 : vector<16x32xf32>
    %c0_47 = arith.constant 0 : index
    %c0_48 = arith.constant 0 : index
    %129 = vector.load %arg8[%c0_47, %c0_48] : memref<16x32xf32, #tpu.memory_space<vmem>>, vector<16x32xf32>
    tpu.vector_store %arg8[%c0_47, %c0_48], %128 {strides = array<i32>} : memref<16x32xf32, #tpu.memory_space<vmem>>, vector<16x32xf32>,
    return
  }
}

</mosaic_0001>

<llo_original>
// kernel: transformer_layer.1
$region0: #{transformer_layer.1}
  #allocation0 [shape = 'u32[]', space=smem, size = 0x4, offset = 0x4, fixed_abs, tag = 'smem constant byte address 0x4 - core index']
  #allocation1 [shape = 'u32[72,128]{1,0:T(1,128)}', space=vmem, size = 0x9000, scoped, tag = 'internal scratch']
  %s0 = inlined_call_operand.hbm [shape: f32[16,32], index: 0, kind: input, shape index: {}]
  %s1 = inlined_call_operand.vmem [shape: f32[16,16], index: 1, kind: input, shape index: {}]
  %s2 = inlined_call_operand.vmem [shape: f32[16,1], index: 2, kind: input, shape index: {}]
  %s3 = inlined_call_operand.vmem [shape: f32[32,96], index: 3, kind: input, shape index: {}]
  %s4 = inlined_call_operand.vmem [shape: f32[32,32], index: 4, kind: input, shape index: {}]
  %s5 = inlined_call_operand.vmem [shape: f32[32,64], index: 5, kind: input, shape index: {}]
  %s6 = inlined_call_operand.vmem [shape: f32[64,32], index: 6, kind: input, shape index: {}]
  %s7 = inlined_call_operand.vmem [shape: f32[8,128], index: 7, kind: input, shape index: {}]
  %s8 = inlined_call_operand.hbm [shape: f32[16,32], index: 8, kind: output, shape index: {}]
  %s9 = sld [smem:[#allocation0]]
  $region46: #{transformer_layer.1} parent=0
    _
  %s11 = ssub.s32 1, %s9
  %s12 = scalar_select 0, %s11, %s9
  $region1: #{transformer_layer.1} parent=0
    #allocation2 [shape = 'u8[8192]{0}', space=vmem, size = 0x2000, scoped, tag = 'input window, operand 0, single buffered']
    #allocation3 [shape = 's32[1]{0}', space=sflag, size = 0x4, scoped, tag = 'scoped memory for transformer_layer.1']
    #allocation4 [shape = 's32[1]{0}', space=sflag, size = 0x4, scoped, tag = 'scoped memory for transformer_layer.1']
    #allocation5 [shape = 'u8[8192]{0}', space=vmem, size = 0x2000, scoped, tag = 'output window, operand 0, single buffered']
    %13 = vsyncpa [#allocation3], 0
    %14 = vsyncpa [#allocation4], 0
    // Predicated region
    $region2: #{transformer_layer.1} parent=1 // pred_check
      _
    $region3: #{transformer_layer.1} parent=1 // pred_check_branch
      %16 = sbr.rel (0) target = $region5
    $region4: #{transformer_layer.1} parent=1 // pred_region
      %18 = vsyncadd [#allocation3], 0
      %s19 = sshll.u32 %s0, 4
      %s20 = int_to_ptr.hbm [resolvable:$true] %s19
      %s21 = sshll.u32 [#allocation2], 4
      %s22 = int_to_ptr.vmem [resolvable:$true] %s21
      %27 = dma.hbm_to_vmem [thread:$0]  %s20, 256, %s22, [#allocation3], 128, 128, 8
    $region5: #{transformer_layer.1} parent=1 // pred_fallthru
      _
    // Predicated region
    $region6: #{transformer_layer.1} parent=1 // pred_check
      _
    $region7: #{transformer_layer.1} parent=1 // pred_check_branch
      %29 = sbr.rel (0) target = $region9
    $region8: #{transformer_layer.1} parent=1 // pred_region
      _
    $region9: #{transformer_layer.1} parent=1 // pred_fallthru
      _
    // Predicated region
    $region10: #{transformer_layer.1} parent=1 // pred_check
      _
    $region11: #{transformer_layer.1} parent=1 // pred_check_branch
      %31 = sbr.rel (0) target = $region13
    $region12: #{transformer_layer.1} parent=1 // pred_region
      _
    $region13: #{transformer_layer.1} parent=1 // pred_fallthru
      _
    // Predicated region
    $region14: #{transformer_layer.1} parent=1 // pred_check
      _
    $region15: #{transformer_layer.1} parent=1 // pred_check_branch
      %33 = sbr.rel (0) target = $region17
    $region16: #{transformer_layer.1} parent=1 // pred_region
      _
    $region17: #{transformer_layer.1} parent=1 // pred_fallthru
      _
    // Predicated region
    $region18: #{transformer_layer.1} parent=1 // pred_check
      _
    $region19: #{transformer_layer.1} parent=1 // pred_check_branch
      %35 = sbr.rel (0) target = $region21
    $region20: #{transformer_layer.1} parent=1 // pred_region
      _
    $region21: #{transformer_layer.1} parent=1 // pred_fallthru
      _
    // Predicated region
    $region22: #{transformer_layer.1} parent=1 // pred_check
      _
    $region23: #{transformer_layer.1} parent=1 // pred_check_branch
      %37 = sbr.rel (0) target = $region25
    $region24: #{transformer_layer.1} parent=1 // pred_region
      _
    $region25: #{transformer_layer.1} parent=1 // pred_fallthru
      _
    // Predicated region
    $region26: #{transformer_layer.1} parent=1 // pred_check
      _
    $region27: #{transformer_layer.1} parent=1 // pred_check_branch
      %39 = sbr.rel (0) target = $region29
    $region28: #{transformer_layer.1} parent=1 // pred_region
      _
    $region29: #{transformer_layer.1} parent=1 // pred_fallthru
      _
    // Predicated region
    $region30: #{transformer_layer.1} parent=1 // pred_check
      _
    $region31: #{transformer_layer.1} parent=1 // pred_check_branch
      %41 = sbr.rel (0) target = $region33
    $region32: #{transformer_layer.1} parent=1 // pred_region
      _
    $region33: #{transformer_layer.1} parent=1 // pred_fallthru
      _
    // Predicated region
    $region34: #{transformer_layer.1} parent=1 // pred_check
      _
    $region35: #{transformer_layer.1} parent=1 // pred_check_branch
      %43 = sbr.rel (0) target = $region37
    $region36: #{transformer_layer.1} parent=1 // pred_region
      %45 = dma.done [#allocation3], 256
    $region37: #{transformer_layer.1} parent=1 // pred_fallthru
      _
    %v46 = vld [vmem:[#allocation2] sm:$0xff]
    %v47 = vld [vmem:[#allocation2 + $0x8] sm:$0xff]
    %v48 = vld [vmem:[%s1] sm:$0xff]
    %v49 = vld [vmem:[%s1 + $0x8] sm:$0xff]
    %v50 = vld [vmem:[%s2] sm:$0xff]
    %v51 = vld [vmem:[%s2 + $0x8] sm:$0xff]
    %v52 = vld [vmem:[%s7] sm:$0x1]
    %v53 = vld [vmem:[%s7 + $0x1] sm:$0x1]
    %v54 = vld [vmem:[%s7 + $0x2] sm:$0x1]
    %v55 = vld [vmem:[%s7 + $0x3] sm:$0x1]
    %v56 = vld [vmem:[%s7 + $0x4] sm:$0x1]
    %v57 = vld [vmem:[%s7 + $0x5] sm:$0x1]
    %v58 = vld [vmem:[%s7 + $0x6] sm:$0x1]
    %v59 = vld [vmem:[%s7 + $0x7] sm:$0x1]
    %v60 = vld [vmem:[%s3] sm:$0xff]
    %v61 = vld [vmem:[%s3 + $0x8] sm:$0xff]
    %v62 = vld [vmem:[%s3 + $0x10] sm:$0xff]
    %v63 = vld [vmem:[%s3 + $0x18] sm:$0xff]
    %v64 = vperm.slane %v52, 0
    %vm65 = vcmask 261120
    %v67 = vsel %vm65, %v46, 0
    %v70 = vsel %vm65, %v47, 0
    %72 = vmatpush.msra.mxu0 0.0
    %73 = vmatpush.msra.mxu0 0.0
    %74 = vmatpush.msra.mxu0 0.0
    %75 = vmatpush.msra.mxu0 0.0
    %76 = vmatpush.msra.mxu0 0.0
    %77 = vmatpush.msra.mxu0 0.0
    %78 = vmatpush.msra.mxu0 0.0
    %79 = vmatpush.msra.mxu0 0.0
    %80 = vmatpush.msra.mxu0 0.0
    %81 = vmatpush.msra.mxu0 0.0
    %82 = vmatpush.msra.mxu0 0.0
    %83 = vmatpush.msra.mxu0 0.0
    %84 = vmatpush.msra.mxu0 %v63
    %85 = vmatpush.msra.mxu0 %v62
    %86 = vmatpush.msra.mxu0 %v61
    %87 = vmatpush.msra.mxu0 %v60
    %88 = vmatmul.f32.gmra.mxu0 %v67
    %v89 = vpop.f32.mrf.mxu0
    %v90 = vadd.f32 %v64, %v89
    %91 = vmatmul.f32.gmra.mxu0 %v70
    %v92 = vpop.f32.mrf.mxu0
    %v93 = vadd.f32 %v64, %v92
    %94 = vdwg.mxu0
    %97 = vrot.lane.b32.xlu0 %v90, 96
    %v98 = vpop.permute.xlu0 %97
    %99 = vrot.lane.b32.xlu0 %v93, 96
    %v100 = vpop.permute.xlu0 %99
    %vm101 = vcmask 64512
    %v102 = vsel %vm101, %v90, 0
    %v104 = vsel %vm101, %v93, 0
    %v106 = vsel %vm101, %v98, 0
    %v108 = vsel %vm101, %v100, 0
    %110 = vmatpush.xpose.msra.mxu0 0.0
    %111 = vmatpush.xpose.msra.mxu0 0.0
    %112 = vmatpush.xpose.msra.mxu0 0.0
    %113 = vmatpush.xpose.msra.mxu0 0.0
    %114 = vmatpush.xpose.msra.mxu0 0.0
    %115 = vmatpush.xpose.msra.mxu0 0.0
    %116 = vmatpush.xpose.msra.mxu0 0.0
    %117 = vmatpush.xpose.msra.mxu0 0.0
    %118 = vmatpush.xpose.msra.mxu0 0.0
    %119 = vmatpush.xpose.msra.mxu0 0.0
    %120 = vmatpush.xpose.msra.mxu0 0.0
    %121 = vmatpush.xpose.msra.mxu0 0.0
    %122 = vmatpush.xpose.msra.mxu0 0.0
    %123 = vmatpush.xpose.msra.mxu0 0.0
    %124 = vmatpush.xpose.msra.mxu0 %v108
    %125 = vmatpush.xpose.msra.mxu0 %v106
    %126 = vmatmul.f32.gmra.mxu0 %v102
    %v127 = vpop.f32.mrf.mxu0
    %v128 = vadd.f32 0.0, %v127
    %129 = vmatmul.f32.gmra.mxu0 %v104
    %v130 = vpop.f32.mrf.mxu0
    %v131 = vadd.f32 0.0, %v130
    %132 = vdwg.mxu0
    %133 = vrot.lane.b32.xlu0 %v90, 120
    %v134 = vpop.permute.xlu0 %133
    %135 = vrot.lane.b32.xlu0 %v93, 120
    %v136 = vpop.permute.xlu0 %135
    %137 = vrot.lane.b32.xlu0 %v90, 88
    %v138 = vpop.permute.xlu0 %137
    %139 = vrot.lane.b32.xlu0 %v93, 88
    %v140 = vpop.permute.xlu0 %139
    %v141 = vsel %vm101, %v134, 0
    %v143 = vsel %vm101, %v136, 0
    %v145 = vsel %vm101, %v138, 0
    %v147 = vsel %vm101, %v140, 0
    %149 = vmatpush.xpose.msra.mxu0 0.0
    %150 = vmatpush.xpose.msra.mxu0 0.0
    %151 = vmatpush.xpose.msra.mxu0 0.0
    %152 = vmatpush.xpose.msra.mxu0 0.0
    %153 = vmatpush.xpose.msra.mxu0 0.0
    %154 = vmatpush.xpose.msra.mxu0 0.0
    %155 = vmatpush.xpose.msra.mxu0 0.0
    %156 = vmatpush.xpose.msra.mxu0 0.0
    %157 = vmatpush.xpose.msra.mxu0 0.0
    %158 = vmatpush.xpose.msra.mxu0 0.0
    %159 = vmatpush.xpose.msra.mxu0 0.0
    %160 = vmatpush.xpose.msra.mxu0 0.0
    %161 = vmatpush.xpose.msra.mxu0 0.0
    %162 = vmatpush.xpose.msra.mxu0 0.0
    %163 = vmatpush.xpose.msra.mxu0 %v147
    %164 = vmatpush.xpose.msra.mxu0 %v145
    %165 = vmatmul.f32.gmra.mxu0 %v141
    %v166 = vpop.f32.mrf.mxu0
    %v167 = vadd.f32 0.0, %v166
    %168 = vmatmul.f32.gmra.mxu0 %v143
    %v169 = vpop.f32.mrf.mxu0
    %v170 = vadd.f32 0.0, %v169
    %171 = vdwg.mxu0
    %172 = vrot.lane.b32.xlu0 %v90, 112
    %v173 = vpop.permute.xlu0 %172
    %174 = vrot.lane.b32.xlu0 %v93, 112
    %v175 = vpop.permute.xlu0 %174
    %176 = vrot.lane.b32.xlu0 %v90, 80
    %v177 = vpop.permute.xlu0 %176
    %178 = vrot.lane.b32.xlu0 %v93, 80
    %v179 = vpop.permute.xlu0 %178
    %v180 = vsel %vm101, %v173, 0
    %v182 = vsel %vm101, %v175, 0
    %v184 = vsel %vm101, %v177, 0
    %v186 = vsel %vm101, %v179, 0
    %188 = vmatpush.xpose.msra.mxu0 0.0
    %189 = vmatpush.xpose.msra.mxu0 0.0
    %190 = vmatpush.xpose.msra.mxu0 0.0
    %191 = vmatpush.xpose.msra.mxu0 0.0
    %192 = vmatpush.xpose.msra.mxu0 0.0
    %193 = vmatpush.xpose.msra.mxu0 0.0
    %194 = vmatpush.xpose.msra.mxu0 0.0
    %195 = vmatpush.xpose.msra.mxu0 0.0
    %196 = vmatpush.xpose.msra.mxu0 0.0
    %197 = vmatpush.xpose.msra.mxu0 0.0
    %198 = vmatpush.xpose.msra.mxu0 0.0
    %199 = vmatpush.xpose.msra.mxu0 0.0
    %200 = vmatpush.xpose.msra.mxu0 0.0
    %201 = vmatpush.xpose.msra.mxu0 0.0
    %202 = vmatpush.xpose.msra.mxu0 %v186
    %203 = vmatpush.xpose.msra.mxu0 %v184
    %204 = vmatmul.f32.gmra.mxu0 %v180
    %v205 = vpop.f32.mrf.mxu0
    %v206 = vadd.f32 0.0, %v205
    %207 = vmatmul.f32.gmra.mxu0 %v182
    %v208 = vpop.f32.mrf.mxu0
    %v209 = vadd.f32 0.0, %v208
    %210 = vdwg.mxu0
    %211 = vrot.lane.b32.xlu0 %v90, 104
    %v212 = vpop.permute.xlu0 %211
    %213 = vrot.lane.b32.xlu0 %v93, 104
    %v214 = vpop.permute.xlu0 %213
    %215 = vrot.lane.b32.xlu0 %v90, 72
    %v216 = vpop.permute.xlu0 %215
    %217 = vrot.lane.b32.xlu0 %v93, 72
    %v218 = vpop.permute.xlu0 %217
    %v219 = vsel %vm101, %v212, 0
    %v221 = vsel %vm101, %v214, 0
    %v223 = vsel %vm101, %v216, 0
    %v225 = vsel %vm101, %v218, 0
    %227 = vmatpush.xpose.msra.mxu0 0.0
    %228 = vmatpush.xpose.msra.mxu0 0.0
    %229 = vmatpush.xpose.msra.mxu0 0.0
    %230 = vmatpush.xpose.msra.mxu0 0.0
    %231 = vmatpush.xpose.msra.mxu0 0.0
    %232 = vmatpush.xpose.msra.mxu0 0.0
    %233 = vmatpush.xpose.msra.mxu0 0.0
    %234 = vmatpush.xpose.msra.mxu0 0.0
    %235 = vmatpush.xpose.msra.mxu0 0.0
    %236 = vmatpush.xpose.msra.mxu0 0.0
    %237 = vmatpush.xpose.msra.mxu0 0.0
    %238 = vmatpush.xpose.msra.mxu0 0.0
    %239 = vmatpush.xpose.msra.mxu0 0.0
    %240 = vmatpush.xpose.msra.mxu0 0.0
    %241 = vmatpush.xpose.msra.mxu0 %v225
    %242 = vmatpush.xpose.msra.mxu0 %v223
    %243 = vmatmul.f32.gmra.mxu0 %v219
    %v244 = vpop.f32.mrf.mxu0
    %v245 = vadd.f32 0.0, %v244
    %246 = vmatmul.f32.gmra.mxu0 %v221
    %v247 = vpop.f32.mrf.mxu0
    %v248 = vadd.f32 0.0, %v247
    %249 = vdwg.mxu0
    %v250 = vmul.f32 %v128, 0.35355338
    %v251 = vmul.f32 %v131, 0.35355338
    %v252 = vmul.f32 %v167, 0.35355338
    %v253 = vmul.f32 %v170, 0.35355338
    %v254 = vmul.f32 %v206, 0.35355338
    %v255 = vmul.f32 %v209, 0.35355338
    %v256 = vmul.f32 %v245, 0.35355338
    %v257 = vmul.f32 %v248, 0.35355338
    %v258 = vadd.f32 %v250, %v48
    %v259 = vadd.f32 %v251, %v49
    %v260 = vadd.f32 %v252, %v48
    %v261 = vadd.f32 %v253, %v49
    %v262 = vadd.f32 %v254, %v48
    %v263 = vadd.f32 %v255, %v49
    %v264 = vadd.f32 %v256, %v48
    %v265 = vadd.f32 %v257, %v49
    %vm266 = vcmask 130048
    %v267 = vsel %vm266, %v258, -inf
    %268 = vmax.xlane.f32.xlu0 %v267
    %v269 = vpop.xlane.xlu0 %268
    %v270 = vsel %vm266, %v259, -inf
    %271 = vmax.xlane.f32.xlu0 %v270
    %v272 = vpop.xlane.xlu0 %271
    %v273 = vsel %vm266, %v260, -inf
    %274 = vmax.xlane.f32.xlu0 %v273
    %v275 = vpop.xlane.xlu0 %274
    %v276 = vsel %vm266, %v261, -inf
    %277 = vmax.xlane.f32.xlu0 %v276
    %v278 = vpop.xlane.xlu0 %277
    %v279 = vsel %vm266, %v262, -inf
    %280 = vmax.xlane.f32.xlu0 %v279
    %v281 = vpop.xlane.xlu0 %280
    %v282 = vsel %vm266, %v263, -inf
    %283 = vmax.xlane.f32.xlu0 %v282
    %v284 = vpop.xlane.xlu0 %283
    %v285 = vsel %vm266, %v264, -inf
    %286 = vmax.xlane.f32.xlu0 %v285
    %v287 = vpop.xlane.xlu0 %286
    %v288 = vsel %vm266, %v265, -inf
    %289 = vmax.xlane.f32.xlu0 %v288
    %v290 = vpop.xlane.xlu0 %289
    %v291 = vsub.f32 %v258, %v269
    %v292 = vsub.f32 %v259, %v272
    %v293 = vsub.f32 %v260, %v275
    %v294 = vsub.f32 %v261, %v278
    %v295 = vsub.f32 %v262, %v281
    %v296 = vsub.f32 %v263, %v284
    %v297 = vsub.f32 %v264, %v287
    %v298 = vsub.f32 %v265, %v290
    %v299 = vmul.f32 %v291, 1.442695
    %v300 = vpow.pop %v299
    %v301 = vmul.f32 %v292, 1.442695
    %v302 = vpow.pop %v301
    %v303 = vmul.f32 %v293, 1.442695
    %v304 = vpow.pop %v303
    %v305 = vmul.f32 %v294, 1.442695
    %v306 = vpow.pop %v305
    %v307 = vmul.f32 %v295, 1.442695
    %v308 = vpow.pop %v307
    %v309 = vmul.f32 %v296, 1.442695
    %v310 = vpow.pop %v309
    %v311 = vmul.f32 %v297, 1.442695
    %v312 = vpow.pop %v311
    %v313 = vmul.f32 %v298, 1.442695
    %v314 = vpow.pop %v313
    %v315 = vsel %vm266, %v300, 0.0
    %316 = vadd.xlane.f32.xlu0 %v315
    %v317 = vpop.xlane.xlu0 %316
    %v318 = vsel %vm266, %v302, 0.0
    %319 = vadd.xlane.f32.xlu0 %v318
    %v320 = vpop.xlane.xlu0 %319
    %v321 = vsel %vm266, %v304, 0.0
    %322 = vadd.xlane.f32.xlu0 %v321
    %v323 = vpop.xlane.xlu0 %322
    %v324 = vsel %vm266, %v306, 0.0
    %325 = vadd.xlane.f32.xlu0 %v324
    %v326 = vpop.xlane.xlu0 %325
    %v327 = vsel %vm266, %v308, 0.0
    %328 = vadd.xlane.f32.xlu0 %v327
    %v329 = vpop.xlane.xlu0 %328
    %v330 = vsel %vm266, %v310, 0.0
    %331 = vadd.xlane.f32.xlu0 %v330
    %v332 = vpop.xlane.xlu0 %331
    %v333 = vsel %vm266, %v312, 0.0
    %334 = vadd.xlane.f32.xlu0 %v333
    %v335 = vpop.xlane.xlu0 %334
    %v336 = vsel %vm266, %v314, 0.0
    %337 = vadd.xlane.f32.xlu0 %v336
    %v338 = vpop.xlane.xlu0 %337
    %v339 = vrcp.pop %v317
    %v340 = vmul.f32 %v317, %v339
    %v341 = vsub.f32 1.0, %v340
    %v342 = vmul.f32 %v339, %v341
    %v343 = vadd.f32 %v339, %v342
    %vm344 = vweird.f32 %v317
    %vm345 = vweird.f32 %v339
    %vm346 = vmor %vm344, %vm345
    %v347 = vsel %vm346, %v339, %v343
    %v348 = vand.u32 2147483647, %v317
    %vm349 = vcmp.eq.f32.partialorder %v348, 8.507059e+37
    %v350 = vand.u32 %v317, 2147483648
    %v351 = vor.u32 1.1754944e-38, %v350
    %v352 = vsel %vm349, %v351, %v347
    %v353 = vmul.f32 %v300, %v352
    %v354 = vrcp.pop %v320
    %v355 = vmul.f32 %v320, %v354
    %v356 = vsub.f32 1.0, %v355
    %v357 = vmul.f32 %v354, %v356
    %v358 = vadd.f32 %v354, %v357
    %vm359 = vweird.f32 %v320
    %vm360 = vweird.f32 %v354
    %vm361 = vmor %vm359, %vm360
    %v362 = vsel %vm361, %v354, %v358
    %v363 = vand.u32 2147483647, %v320
    %vm364 = vcmp.eq.f32.partialorder %v363, 8.507059e+37
    %v365 = vand.u32 %v320, 2147483648
    %v366 = vor.u32 1.1754944e-38, %v365
    %v367 = vsel %vm364, %v366, %v362
    %v368 = vmul.f32 %v302, %v367
    %v369 = vrcp.pop %v323
    %v370 = vmul.f32 %v323, %v369
    %v371 = vsub.f32 1.0, %v370
    %v372 = vmul.f32 %v369, %v371
    %v373 = vadd.f32 %v369, %v372
    %vm374 = vweird.f32 %v323
    %vm375 = vweird.f32 %v369
    %vm376 = vmor %vm374, %vm375
    %v377 = vsel %vm376, %v369, %v373
    %v378 = vand.u32 2147483647, %v323
    %vm379 = vcmp.eq.f32.partialorder %v378, 8.507059e+37
    %v380 = vand.u32 %v323, 2147483648
    %v381 = vor.u32 1.1754944e-38, %v380
    %v382 = vsel %vm379, %v381, %v377
    %v383 = vmul.f32 %v304, %v382
    %v384 = vrcp.pop %v326
    %v385 = vmul.f32 %v326, %v384
    %v386 = vsub.f32 1.0, %v385
    %v387 = vmul.f32 %v384, %v386
    %v388 = vadd.f32 %v384, %v387
    %vm389 = vweird.f32 %v326
    %vm390 = vweird.f32 %v384
    %vm391 = vmor %vm389, %vm390
    %v392 = vsel %vm391, %v384, %v388
    %v393 = vand.u32 2147483647, %v326
    %vm394 = vcmp.eq.f32.partialorder %v393, 8.507059e+37
    %v395 = vand.u32 %v326, 2147483648
    %v396 = vor.u32 1.1754944e-38, %v395
    %v397 = vsel %vm394, %v396, %v392
    %v398 = vmul.f32 %v306, %v397
    %v399 = vrcp.pop %v329
    %v400 = vmul.f32 %v329, %v399
    %v401 = vsub.f32 1.0, %v400
    %v402 = vmul.f32 %v399, %v401
    %v403 = vadd.f32 %v399, %v402
    %vm404 = vweird.f32 %v329
    %vm405 = vweird.f32 %v399
    %vm406 = vmor %vm404, %vm405
    %v407 = vsel %vm406, %v399, %v403
    %v408 = vand.u32 2147483647, %v329
    %vm409 = vcmp.eq.f32.partialorder %v408, 8.507059e+37
    %v410 = vand.u32 %v329, 2147483648
    %v411 = vor.u32 1.1754944e-38, %v410
    %v412 = vsel %vm409, %v411, %v407
    %v413 = vmul.f32 %v308, %v412
    %v414 = vrcp.pop %v332
    %v415 = vmul.f32 %v332, %v414
    %v416 = vsub.f32 1.0, %v415
    %v417 = vmul.f32 %v414, %v416
    %v418 = vadd.f32 %v414, %v417
    %vm419 = vweird.f32 %v332
    %vm420 = vweird.f32 %v414
    %vm421 = vmor %vm419, %vm420
    %v422 = vsel %vm421, %v414, %v418
    %v423 = vand.u32 2147483647, %v332
    %vm424 = vcmp.eq.f32.partialorder %v423, 8.507059e+37
    %v425 = vand.u32 %v332, 2147483648
    %v426 = vor.u32 1.1754944e-38, %v425
    %v427 = vsel %vm424, %v426, %v422
    %v428 = vmul.f32 %v310, %v427
    %v429 = vrcp.pop %v335
    %v430 = vmul.f32 %v335, %v429
    %v431 = vsub.f32 1.0, %v430
    %v432 = vmul.f32 %v429, %v431
    %v433 = vadd.f32 %v429, %v432
    %vm434 = vweird.f32 %v335
    %vm435 = vweird.f32 %v429
    %vm436 = vmor %vm434, %vm435
    %v437 = vsel %vm436, %v429, %v433
    %v438 = vand.u32 2147483647, %v335
    %vm439 = vcmp.eq.f32.partialorder %v438, 8.507059e+37
    %v440 = vand.u32 %v335, 2147483648
    %v441 = vor.u32 1.1754944e-38, %v440
    %v442 = vsel %vm439, %v441, %v437
    %v443 = vmul.f32 %v312, %v442
    %v444 = vrcp.pop %v338
    %v445 = vmul.f32 %v338, %v444
    %v446 = vsub.f32 1.0, %v445
    %v447 = vmul.f32 %v444, %v446
    %v448 = vadd.f32 %v444, %v447
    %vm449 = vweird.f32 %v338
    %vm450 = vweird.f32 %v444
    %vm451 = vmor %vm449, %vm450
    %v452 = vsel %vm451, %v444, %v448
    %v453 = vand.u32 2147483647, %v338
    %vm454 = vcmp.eq.f32.partialorder %v453, 8.507059e+37
    %v455 = vand.u32 %v338, 2147483648
    %v456 = vor.u32 1.1754944e-38, %v455
    %v457 = vsel %vm454, %v456, %v452
    %v458 = vmul.f32 %v314, %v457
    %459 = vrot.lane.b32.xlu0 %v90, 64
    %v460 = vpop.permute.xlu0 %459
    %461 = vrot.lane.b32.xlu0 %v93, 64
    %v462 = vpop.permute.xlu0 %461
    %v466 = vsel %vm266, %v353, 0
    %v469 = vsel %vm266, %v368, 0
    %471 = vmatpush.msra.mxu0 0.0
    %472 = vmatpush.msra.mxu0 0.0
    %473 = vmatpush.msra.mxu0 0.0
    %474 = vmatpush.msra.mxu0 0.0
    %475 = vmatpush.msra.mxu0 0.0
    %476 = vmatpush.msra.mxu0 0.0
    %477 = vmatpush.msra.mxu0 0.0
    %478 = vmatpush.msra.mxu0 0.0
    %479 = vmatpush.msra.mxu0 0.0
    %480 = vmatpush.msra.mxu0 0.0
    %481 = vmatpush.msra.mxu0 0.0
    %482 = vmatpush.msra.mxu0 0.0
    %483 = vmatpush.msra.mxu0 0.0
    %484 = vmatpush.msra.mxu0 0.0
    %485 = vmatpush.msra.mxu0 %v462
    %486 = vmatpush.msra.mxu0 %v460
    %487 = vmatmul.f32.gmra.mxu0 %v466
    %v488 = vpop.f32.mrf.mxu0
    %v489 = vadd.f32 0.0, %v488
    %490 = vmatmul.f32.gmra.mxu0 %v469
    %v491 = vpop.f32.mrf.mxu0
    %v492 = vadd.f32 0.0, %v491
    %493 = vdwg.mxu0
    %494 = vrot.lane.b32.xlu0 %v90, 56
    %v495 = vpop.permute.xlu0 %494
    %496 = vrot.lane.b32.xlu0 %v93, 56
    %v497 = vpop.permute.xlu0 %496
    %v501 = vsel %vm266, %v383, 0
    %v504 = vsel %vm266, %v398, 0
    %506 = vmatpush.msra.mxu0 0.0
    %507 = vmatpush.msra.mxu0 0.0
    %508 = vmatpush.msra.mxu0 0.0
    %509 = vmatpush.msra.mxu0 0.0
    %510 = vmatpush.msra.mxu0 0.0
    %511 = vmatpush.msra.mxu0 0.0
    %512 = vmatpush.msra.mxu0 0.0
    %513 = vmatpush.msra.mxu0 0.0
    %514 = vmatpush.msra.mxu0 0.0
    %515 = vmatpush.msra.mxu0 0.0
    %516 = vmatpush.msra.mxu0 0.0
    %517 = vmatpush.msra.mxu0 0.0
    %518 = vmatpush.msra.mxu0 0.0
    %519 = vmatpush.msra.mxu0 0.0
    %520 = vmatpush.msra.mxu0 %v497
    %521 = vmatpush.msra.mxu0 %v495
    %522 = vmatmul.f32.gmra.mxu0 %v501
    %v523 = vpop.f32.mrf.mxu0
    %v524 = vadd.f32 0.0, %v523
    %525 = vmatmul.f32.gmra.mxu0 %v504
    %v526 = vpop.f32.mrf.mxu0
    %v527 = vadd.f32 0.0, %v526
    %528 = vdwg.mxu0
    %529 = vrot.lane.b32.xlu0 %v90, 48
    %v530 = vpop.permute.xlu0 %529
    %531 = vrot.lane.b32.xlu0 %v93, 48
    %v532 = vpop.permute.xlu0 %531
    %v536 = vsel %vm266, %v413, 0
    %v539 = vsel %vm266, %v428, 0
    %541 = vmatpush.msra.mxu0 0.0
    %542 = vmatpush.msra.mxu0 0.0
    %543 = vmatpush.msra.mxu0 0.0
    %544 = vmatpush.msra.mxu0 0.0
    %545 = vmatpush.msra.mxu0 0.0
    %546 = vmatpush.msra.mxu0 0.0
    %547 = vmatpush.msra.mxu0 0.0
    %548 = vmatpush.msra.mxu0 0.0
    %549 = vmatpush.msra.mxu0 0.0
    %550 = vmatpush.msra.mxu0 0.0
    %551 = vmatpush.msra.mxu0 0.0
    %552 = vmatpush.msra.mxu0 0.0
    %553 = vmatpush.msra.mxu0 0.0
    %554 = vmatpush.msra.mxu0 0.0
    %555 = vmatpush.msra.mxu0 %v532
    %556 = vmatpush.msra.mxu0 %v530
    %557 = vmatmul.f32.gmra.mxu0 %v536
    %v558 = vpop.f32.mrf.mxu0
    %v559 = vadd.f32 0.0, %v558
    %560 = vmatmul.f32.gmra.mxu0 %v539
    %v561 = vpop.f32.mrf.mxu0
    %v562 = vadd.f32 0.0, %v561
    %563 = vdwg.mxu0
    %564 = vrot.lane.b32.xlu0 %v90, 40
    %v565 = vpop.permute.xlu0 %564
    %566 = vrot.lane.b32.xlu0 %v93, 40
    %v567 = vpop.permute.xlu0 %566
    %v571 = vsel %vm266, %v443, 0
    %v574 = vsel %vm266, %v458, 0
    %576 = vmatpush.msra.mxu0 0.0
    %577 = vmatpush.msra.mxu0 0.0
    %578 = vmatpush.msra.mxu0 0.0
    %579 = vmatpush.msra.mxu0 0.0
    %580 = vmatpush.msra.mxu0 0.0
    %581 = vmatpush.msra.mxu0 0.0
    %582 = vmatpush.msra.mxu0 0.0
    %583 = vmatpush.msra.mxu0 0.0
    %584 = vmatpush.msra.mxu0 0.0
    %585 = vmatpush.msra.mxu0 0.0
    %586 = vmatpush.msra.mxu0 0.0
    %587 = vmatpush.msra.mxu0 0.0
    %588 = vmatpush.msra.mxu0 0.0
    %589 = vmatpush.msra.mxu0 0.0
    %590 = vmatpush.msra.mxu0 %v567
    %591 = vmatpush.msra.mxu0 %v565
    %592 = vmatmul.f32.gmra.mxu0 %v571
    %v593 = vpop.f32.mrf.mxu0
    %v594 = vadd.f32 0.0, %v593
    %595 = vmatmul.f32.gmra.mxu0 %v574
    %v596 = vpop.f32.mrf.mxu0
    %v597 = vadd.f32 0.0, %v596
    %598 = vdwg.mxu0
    %601 = vrot.lane.b32.xlu0 %v524, 8
    %v602 = vpop.permute.xlu0 %601
    %603 = vrot.lane.b32.xlu0 %v527, 8
    %v604 = vpop.permute.xlu0 %603
    %609 = vrot.lane.b32.xlu0 %v559, 16
    %v610 = vpop.permute.xlu0 %609
    %611 = vrot.lane.b32.xlu0 %v562, 16
    %v612 = vpop.permute.xlu0 %611
    %617 = vrot.lane.b32.xlu0 %v594, 24
    %v618 = vpop.permute.xlu0 %617
    %619 = vrot.lane.b32.xlu0 %v597, 24
    %v620 = vpop.permute.xlu0 %619
    %v623 = vsel %vm101, %v489, %v602
    %v624 = vsel %vm101, %v492, %v604
    %v625 = vsel %vm266, %v623, %v610
    %v626 = vsel %vm266, %v624, %v612
    %vm627 = vcmask 195584
    %v628 = vsel %vm627, %v625, %v618
    %v629 = vsel %vm627, %v626, %v620
    %v630 = vld [vmem:[%s4] sm:$0xff]
    %v631 = vld [vmem:[%s4 + $0x8] sm:$0xff]
    %v632 = vld [vmem:[%s4 + $0x10] sm:$0xff]
    %v633 = vld [vmem:[%s4 + $0x18] sm:$0xff]
    %v634 = vperm.slane %v53, 0
    %v636 = vsel %vm65, %v628, 0
    %v639 = vsel %vm65, %v629, 0
    %641 = vmatpush.msra.mxu0 0.0
    %642 = vmatpush.msra.mxu0 0.0
    %643 = vmatpush.msra.mxu0 0.0
    %644 = vmatpush.msra.mxu0 0.0
    %645 = vmatpush.msra.mxu0 0.0
    %646 = vmatpush.msra.mxu0 0.0
    %647 = vmatpush.msra.mxu0 0.0
    %648 = vmatpush.msra.mxu0 0.0
    %649 = vmatpush.msra.mxu0 0.0
    %650 = vmatpush.msra.mxu0 0.0
    %651 = vmatpush.msra.mxu0 0.0
    %652 = vmatpush.msra.mxu0 0.0
    %653 = vmatpush.msra.mxu0 %v633
    %654 = vmatpush.msra.mxu0 %v632
    %655 = vmatpush.msra.mxu0 %v631
    %656 = vmatpush.msra.mxu0 %v630
    %657 = vmatmul.f32.gmra.mxu0 %v636
    %v658 = vpop.f32.mrf.mxu0
    %v659 = vadd.f32 %v634, %v658
    %660 = vmatmul.f32.gmra.mxu0 %v639
    %v661 = vpop.f32.mrf.mxu0
    %v662 = vadd.f32 %v634, %v661
    %663 = vdwg.mxu0
    %665 = vset.pattern.permute.xlu0 0
    %666 = vperm.xlu0 %665, %v50
    %v667 = vpop.permute.xlu0 %666
    %670 = vset.pattern.permute.xlu0 0
    %671 = vperm.xlu0 %670, %v51
    %v672 = vpop.permute.xlu0 %671
    %v674 = vmul.f32 %v659, %v667
    %v675 = vmul.f32 %v662, %v672
    %v676 = vadd.f32 %v674, %v46
    %v677 = vadd.f32 %v675, %v47
    %v678 = vsel %vm65, %v676, 0.0
    %679 = vadd.xlane.f32.xlu0 %v678
    %v680 = vpop.xlane.xlu0 %679
    %v681 = vsel %vm65, %v677, 0.0
    %682 = vadd.xlane.f32.xlu0 %v681
    %v683 = vpop.xlane.xlu0 %682
    %v684 = vrcp.pop 32.0
    %v685 = vmul.f32 32.0, %v684
    %v686 = vsub.f32 1.0, %v685
    %v687 = vmul.f32 %v684, %v686
    %v688 = vadd.f32 %v684, %v687
    %vm689 = vweird.f32 %v684
    %v690 = vsel %vm689, %v684, %v688
    %v691 = vmul.f32 %v680, %v690
    %v692 = vmul.f32 %v683, %v690
    %v693 = vsub.f32 %v676, %v691
    %v694 = vsub.f32 %v677, %v692
    %v695 = vmul.f32 %v693, %v693
    %v696 = vmul.f32 %v694, %v694
    %v697 = vsel %vm65, %v695, 0.0
    %698 = vadd.xlane.f32.xlu0 %v697
    %v699 = vpop.xlane.xlu0 %698
    %v700 = vsel %vm65, %v696, 0.0
    %701 = vadd.xlane.f32.xlu0 %v700
    %v702 = vpop.xlane.xlu0 %701
    %v703 = vmul.f32 %v699, %v690
    %v704 = vmul.f32 %v702, %v690
    %v705 = vadd.f32 %v703, 1e-05
    %v706 = vadd.f32 %v704, 1e-05
    %v707 = vrsqrt.pop %v705
    %v708 = vmul.f32 %v707, %v705
    %v709 = vmul.f32 %v708, %v707
    %v710 = vmul.f32 0.5, %v709
    %v711 = vsub.f32 1.5, %v710
    %v712 = vmul.f32 %v707, %v711
    %vm713 = vweird.f32 %v705
    %vm714 = vweird.f32 %v707
    %vm715 = vmor %vm713, %vm714
    %v716 = vsel %vm715, %v707, %v712
    %v717 = vrsqrt.pop %v706
    %v718 = vmul.f32 %v717, %v706
    %v719 = vmul.f32 %v718, %v717
    %v720 = vmul.f32 0.5, %v719
    %v721 = vsub.f32 1.5, %v720
    %v722 = vmul.f32 %v717, %v721
    %vm723 = vweird.f32 %v706
    %vm724 = vweird.f32 %v717
    %vm725 = vmor %vm723, %vm724
    %v726 = vsel %vm725, %v717, %v722
    %v727 = vmul.f32 %v693, %v716
    %v728 = vmul.f32 %v694, %v726
    %v729 = vperm.slane %v54, 0
    %v730 = vmul.f32 %v727, %v729
    %v731 = vmul.f32 %v728, %v729
    %v732 = vperm.slane %v55, 0
    %v733 = vadd.f32 %v730, %v732
    %v734 = vadd.f32 %v731, %v732
    %v735 = vld [vmem:[%s5] sm:$0xff]
    %v736 = vld [vmem:[%s5 + $0x8] sm:$0xff]
    %v737 = vld [vmem:[%s5 + $0x10] sm:$0xff]
    %v738 = vld [vmem:[%s5 + $0x18] sm:$0xff]
    %v739 = vperm.slane %v56, 0
    %v741 = vsel %vm65, %v733, 0
    %v744 = vsel %vm65, %v734, 0
    %746 = vmatpush.msra.mxu0 0.0
    %747 = vmatpush.msra.mxu0 0.0
    %748 = vmatpush.msra.mxu0 0.0
    %749 = vmatpush.msra.mxu0 0.0
    %750 = vmatpush.msra.mxu0 0.0
    %751 = vmatpush.msra.mxu0 0.0
    %752 = vmatpush.msra.mxu0 0.0
    %753 = vmatpush.msra.mxu0 0.0
    %754 = vmatpush.msra.mxu0 0.0
    %755 = vmatpush.msra.mxu0 0.0
    %756 = vmatpush.msra.mxu0 0.0
    %757 = vmatpush.msra.mxu0 0.0
    %758 = vmatpush.msra.mxu0 %v738
    %759 = vmatpush.msra.mxu0 %v737
    %760 = vmatpush.msra.mxu0 %v736
    %761 = vmatpush.msra.mxu0 %v735
    %762 = vmatmul.f32.gmra.mxu0 %v741
    %v763 = vpop.f32.mrf.mxu0
    %v764 = vadd.f32 %v739, %v763
    %765 = vmatmul.f32.gmra.mxu0 %v744
    %v766 = vpop.f32.mrf.mxu0
    %v767 = vadd.f32 %v739, %v766
    %768 = vdwg.mxu0
    %v769 = vmax.f32 %v764, 0.0
    %v770 = vmax.f32 %v767, 0.0
    %v771 = vld [vmem:[%s6] sm:$0xff]
    %v772 = vld [vmem:[%s6 + $0x8] sm:$0xff]
    %v773 = vld [vmem:[%s6 + $0x10] sm:$0xff]
    %v774 = vld [vmem:[%s6 + $0x18] sm:$0xff]
    %v775 = vld [vmem:[%s6 + $0x20] sm:$0xff]
    %v776 = vld [vmem:[%s6 + $0x28] sm:$0xff]
    %v777 = vld [vmem:[%s6 + $0x30] sm:$0xff]
    %v778 = vld [vmem:[%s6 + $0x38] sm:$0xff]
    %v779 = vperm.slane %v57, 0
    %vm780 = vcmask 523264
    %v782 = vsel %vm780, %v769, 0
    %v785 = vsel %vm780, %v770, 0
    %787 = vmatpush.msra.mxu0 0.0
    %788 = vmatpush.msra.mxu0 0.0
    %789 = vmatpush.msra.mxu0 0.0
    %790 = vmatpush.msra.mxu0 0.0
    %791 = vmatpush.msra.mxu0 0.0
    %792 = vmatpush.msra.mxu0 0.0
    %793 = vmatpush.msra.mxu0 0.0
    %794 = vmatpush.msra.mxu0 0.0
    %795 = vmatpush.msra.mxu0 %v778
    %796 = vmatpush.msra.mxu0 %v777
    %797 = vmatpush.msra.mxu0 %v776
    %798 = vmatpush.msra.mxu0 %v775
    %799 = vmatpush.msra.mxu0 %v774
    %800 = vmatpush.msra.mxu0 %v773
    %801 = vmatpush.msra.mxu0 %v772
    %802 = vmatpush.msra.mxu0 %v771
    %803 = vmatmul.f32.gmra.mxu0 %v782
    %v804 = vpop.f32.mrf.mxu0
    %v805 = vadd.f32 %v779, %v804
    %806 = vmatmul.f32.gmra.mxu0 %v785
    %v807 = vpop.f32.mrf.mxu0
    %v808 = vadd.f32 %v779, %v807
    %809 = vdwg.mxu0
    %v810 = vmul.f32 %v805, %v667
    %v811 = vmul.f32 %v808, %v672
    %v812 = vadd.f32 %v810, %v733
    %v813 = vadd.f32 %v811, %v734
    %v814 = vsel %vm65, %v812, 0.0
    %815 = vadd.xlane.f32.xlu0 %v814
    %v816 = vpop.xlane.xlu0 %815
    %v817 = vsel %vm65, %v813, 0.0
    %818 = vadd.xlane.f32.xlu0 %v817
    %v819 = vpop.xlane.xlu0 %818
    %v820 = vmul.f32 %v816, %v690
    %v821 = vmul.f32 %v819, %v690
    %v822 = vsub.f32 %v812, %v820
    %v823 = vsub.f32 %v813, %v821
    %v824 = vmul.f32 %v822, %v822
    %v825 = vmul.f32 %v823, %v823
    %v826 = vsel %vm65, %v824, 0.0
    %827 = vadd.xlane.f32.xlu0 %v826
    %v828 = vpop.xlane.xlu0 %827
    %v829 = vsel %vm65, %v825, 0.0
    %830 = vadd.xlane.f32.xlu0 %v829
    %v831 = vpop.xlane.xlu0 %830
    %v832 = vmul.f32 %v828, %v690
    %v833 = vmul.f32 %v831, %v690
    %v834 = vadd.f32 %v832, 1e-05
    %v835 = vadd.f32 %v833, 1e-05
    %v836 = vrsqrt.pop %v834
    %v837 = vmul.f32 %v836, %v834
    %v838 = vmul.f32 %v837, %v836
    %v839 = vmul.f32 0.5, %v838
    %v840 = vsub.f32 1.5, %v839
    %v841 = vmul.f32 %v836, %v840
    %vm842 = vweird.f32 %v834
    %vm843 = vweird.f32 %v836
    %vm844 = vmor %vm842, %vm843
    %v845 = vsel %vm844, %v836, %v841
    %v846 = vrsqrt.pop %v835
    %v847 = vmul.f32 %v846, %v835
    %v848 = vmul.f32 %v847, %v846
    %v849 = vmul.f32 0.5, %v848
    %v850 = vsub.f32 1.5, %v849
    %v851 = vmul.f32 %v846, %v850
    %vm852 = vweird.f32 %v835
    %vm853 = vweird.f32 %v846
    %vm854 = vmor %vm852, %vm853
    %v855 = vsel %vm854, %v846, %v851
    %v856 = vmul.f32 %v822, %v845
    %v857 = vmul.f32 %v823, %v855
    %v858 = vperm.slane %v58, 0
    %v859 = vmul.f32 %v856, %v858
    %v860 = vmul.f32 %v857, %v858
    %v861 = vperm.slane %v59, 0
    %v862 = vadd.f32 %v859, %v861
    %v863 = vadd.f32 %v860, %v861
    %v864 = vmul.f32 %v862, %v667
    %v865 = vmul.f32 %v863, %v672
    %866 = vst.msk [vmem:[#allocation5] sm:$0xff] %vm65, %v864
    %867 = vst.msk [vmem:[#allocation5 + $0x8] sm:$0xff] %vm65, %v865
    // Predicated region
    $region38: #{transformer_layer.1} parent=1 // pred_check
      _
    $region39: #{transformer_layer.1} parent=1 // pred_check_branch
      %869 = sbr.rel (0) target = $region41
    $region40: #{transformer_layer.1} parent=1 // pred_region
      %871 = vsyncadd [#allocation4], 0
      %s872 = sshll.u32 [#allocation5], 4
      %s873 = int_to_ptr.vmem [resolvable:$true] %s872
      %s874 = sshll.u32 %s8, 4
      %s875 = int_to_ptr.hbm [resolvable:$true] %s874
      %880 = dma.vmem_to_hbm [thread:$0]  %s873, 256, %s875, [#allocation4], 128, 128, 8
    $region41: #{transformer_layer.1} parent=1 // pred_fallthru
      _
    // Predicated region
    $region42: #{transformer_layer.1} parent=1 // pred_check
      _
    $region43: #{transformer_layer.1} parent=1 // pred_check_branch
      %882 = sbr.rel (0) target = $region45
    $region44: #{transformer_layer.1} parent=1 // pred_region
      %884 = dma.done [#allocation4], 256
    $region45: #{transformer_layer.1} parent=1 // pred_fallthru
      _
    %885 = vsyncpa [#allocation3], 1
    %886 = vsyncpa [#allocation4], 1

</llo_original>
